<compile_context>
chip_gen: v5e
topology: v5e:2x2
jax: 0.10.0
libtpu: 0.0.40
codegen_flags: <defaults>
</compile_context>

<pallas_src>
import functools

import jax
import jax.numpy as jnp
from jax import lax
from jax.experimental import pallas as pl
from jax.experimental.pallas import tpu as pltpu

TRIPLET_MARGIN = 5.0
COS_EPS = 1e-6


def _triplet_tile_kernel(a_tok_ref, p_tok_ref, n_tok_ref, w_ref, psum_ref,
                         *, batch_size):
    """One batch tile: pooled-embed -> cosine triplet hinge -> partial sum."""
    tile_b = a_tok_ref.shape[0]

    # ---- synthetic sentence embedder: mean-pool over seq (sublane reduce) ----
    a_pool = jnp.mean(a_tok_ref[...], axis=1)                     # [TB, H]
    p_pool = jnp.mean(p_tok_ref[...], axis=1)                     # [TB, H]
    n_pool = jnp.mean(n_tok_ref[...], axis=1)                     # [TB, H]

    # ---- single stacked projection matmul: W hits the MXU once per tile ----
    stacked = jnp.concatenate([a_pool, p_pool, n_pool], axis=0)   # [3*TB, H]
    emb = jnp.dot(stacked, w_ref[...],
                  preferred_element_type=jnp.float32)             # [3*TB, D]
    a = emb[0 * tile_b:1 * tile_b]                                # [TB, D]
    p = emb[1 * tile_b:2 * tile_b]
    n = emb[2 * tile_b:3 * tile_b]

    # ---- cosine distances (keepdims 2-D, anchor norm reused, rsqrt on EUP) ----
    aa = jnp.sum(a * a, axis=-1, keepdims=True)                   # [TB, 1]
    pp = jnp.sum(p * p, axis=-1, keepdims=True)
    nn = jnp.sum(n * n, axis=-1, keepdims=True)
    ap = jnp.sum(a * p, axis=-1, keepdims=True)
    an = jnp.sum(a * n, axis=-1, keepdims=True)

    inv_na = lax.rsqrt(aa)
    inv_np = lax.rsqrt(pp)
    inv_nn = lax.rsqrt(nn)
    inv_eps = 1.0 / COS_EPS
    # torch CosineSimilarity: denom = max(||x||*||y||, eps)
    #   => 1/denom = min(inv_nx * inv_ny, 1/eps)
    d_ap = 1.0 - ap * jnp.minimum(inv_na * inv_np, inv_eps)       # [TB, 1]
    d_an = 1.0 - an * jnp.minimum(inv_na * inv_nn, inv_eps)       # [TB, 1]

    # ---- hinge + masked partial sum (mask padded rows of a ragged last tile) ----
    tl = jnp.maximum(d_ap - d_an + TRIPLET_MARGIN, 0.0)           # [TB, 1]
    row = lax.broadcasted_iota(jnp.int32, (tile_b, 1), 0)
    valid = (pl.program_id(0) * tile_b + row) < batch_size
    tl = jnp.where(valid, tl, 0.0)

    psum_ref[...] = jnp.sum(tl).reshape(1, 1, 1)


def batch_offline_triplet_loss(anchor_tok, pos_tok, neg_tok, w, *, tile_b=8):
    """anchor/pos/neg tokens: [B, S, H] f32; w: [H, D] f32 -> scalar loss."""
    B, S, H = anchor_tok.shape
    Hw, D = w.shape
    assert Hw == H
    tile_b = min(tile_b, B)
    nb = pl.cdiv(B, tile_b)

    tok_spec = pl.BlockSpec((tile_b, S, H), lambda i: (i, 0, 0))
    grid_spec = pltpu.PrefetchScalarGridSpec(
        num_scalar_prefetch=0,
        grid=(nb,),
        in_specs=[
            tok_spec,                                   # anchor tokens
            tok_spec,                                   # pos tokens
            tok_spec,                                   # neg tokens
            pl.BlockSpec((H, D), lambda i: (0, 0)),     # W, resident across grid
        ],
        # one partial sum per batch tile; tiny reduction happens in the wrapper
        out_specs=pl.BlockSpec((1, 1, 1), lambda i: (i, 0, 0)),
    )

    partials = pl.pallas_call(
        functools.partial(_triplet_tile_kernel, batch_size=B),
        out_shape=jax.ShapeDtypeStruct((nb, 1, 1), jnp.float32),
        grid_spec=grid_spec,
        compiler_params=pltpu.CompilerParams(
            # batch tiles are independent -> shard across TCs (v7x megacore)
            dimension_semantics=("parallel",),
            # headroom under v7x's 64 MiB physical VMEM; plenty on v5e/v6e
            vmem_limit_bytes=48 * 1024 * 1024,
        ),
    )(anchor_tok, pos_tok, neg_tok, w)

    return jnp.sum(partials) / B


def _reference(anchor_tok, pos_tok, neg_tok, w):
    def embed(t):
        return jnp.mean(t, axis=1) @ w

    def cos_dist(x, y):
        dot = jnp.sum(x * y, axis=-1)
        nx = jnp.sqrt(jnp.sum(x * x, axis=-1))
        ny = jnp.sqrt(jnp.sum(y * y, axis=-1))
        return 1.0 - dot / jnp.maximum(nx * ny, COS_EPS)

    a, p, n = embed(anchor_tok), embed(pos_tok), embed(neg_tok)
    d_ap = cos_dist(a, p)
    d_an = cos_dist(a, n)
    return jnp.mean(jnp.maximum(d_ap - d_an + TRIPLET_MARGIN, 0.0))


if __name__ == "__main__":
    # Small but lane-dense shapes: H = D = 128 (lanes), S = 8 (sublanes),
    # B = 16 with TB = 8 -> a 2-step grid that exercises the pipeline.
    B, S, H, D = 16, 8, 128, 128
    key = jax.random.PRNGKey(0)
    k1, k2, k3, k4 = jax.random.split(key, 4)

    anchor_tok = jax.random.normal(k1, (B, S, H), dtype=jnp.float32)
    pos_tok = jax.random.normal(k2, (B, S, H), dtype=jnp.float32)
    neg_tok = jax.random.normal(k3, (B, S, H), dtype=jnp.float32)
    # deterministic synthetic embedder weight (stand-in for SentenceTransformer)
    w = jax.random.normal(k4, (H, D), dtype=jnp.float32) * 0.1

    loss = batch_offline_triplet_loss(anchor_tok, pos_tok, neg_tok, w, tile_b=8)
    jax.block_until_ready(loss)

    ref = _reference(anchor_tok, pos_tok, neg_tok, w)
    assert jnp.allclose(loss, ref, atol=1e-4, rtol=1e-5), (loss, ref)

    print("KERNEL_OK")
</pallas_src>

<mosaic_0001>
module attributes {stable_mosaic.version = 11 : i64} {
  func.func @_triplet_tile_kernel(%arg0: i32, %arg1: memref<8x8x128xf32, #tpu.memory_space<vmem>>, %arg2: memref<8x8x128xf32, #tpu.memory_space<vmem>>, %arg3: memref<8x8x128xf32, #tpu.memory_space<vmem>>, %arg4: memref<128x128xf32, #tpu.memory_space<vmem>>, %arg5: memref<1x1x1xf32, #tpu.memory_space<vmem>>) attributes {dimension_semantics = [#tpu.dimension_semantics<parallel>], iteration_bounds = array<i64: 2>, scalar_prefetch = 0 : i64, scratch_operands = 0 : i64, tpu.core_type = #tpu.core_type<tc>, window_params = [{transform_indices = @transform_0, window_bounds = array<i64: 8, 8, 128>}, {transform_indices = @transform_1, window_bounds = array<i64: 8, 8, 128>}, {transform_indices = @transform_2, window_bounds = array<i64: 8, 8, 128>}, {pipeline_mode = #tpu.pipeline_mode<synchronous>, transform_indices = @transform_3, window_bounds = array<i64: 128, 128>}, {transform_indices = @transform_4, window_bounds = array<i64: 1, 1, 1>}]} {
    %c0 = arith.constant 0 : index
    %c0_0 = arith.constant 0 : index
    %c0_1 = arith.constant 0 : index
    %0 = vector.load %arg1[%c0, %c0_0, %c0_1] : memref<8x8x128xf32, #tpu.memory_space<vmem>>, vector<8x8x128xf32>
    %cst = arith.constant dense<0.000000e+00> : vector<8x128xf32>
    %1 = vector.multi_reduction <add>, %0, %cst [1] : vector<8x8x128xf32> to vector<8x128xf32>
    %cst_2 = arith.constant 8.000000e+00 : f32
    %2 = vector.broadcast %cst_2 : f32 to vector<8x128xf32>
    %3 = arith.divf %1, %2 : vector<8x128xf32>
    %c0_3 = arith.constant 0 : index
    %c0_4 = arith.constant 0 : index
    %c0_5 = arith.constant 0 : index
    %4 = vector.load %arg2[%c0_3, %c0_4, %c0_5] : memref<8x8x128xf32, #tpu.memory_space<vmem>>, vector<8x8x128xf32>
    %cst_6 = arith.constant dense<0.000000e+00> : vector<8x128xf32>
    %5 = vector.multi_reduction <add>, %4, %cst_6 [1] : vector<8x8x128xf32> to vector<8x128xf32>
    %cst_7 = arith.constant 8.000000e+00 : f32
    %6 = vector.broadcast %cst_7 : f32 to vector<8x128xf32>
    %7 = arith.divf %5, %6 : vector<8x128xf32>
    %c0_8 = arith.constant 0 : index
    %c0_9 = arith.constant 0 : index
    %c0_10 = arith.constant 0 : index
    %8 = vector.load %arg3[%c0_8, %c0_9, %c0_10] : memref<8x8x128xf32, #tpu.memory_space<vmem>>, vector<8x8x128xf32>
    %cst_11 = arith.constant dense<0.000000e+00> : vector<8x128xf32>
    %9 = vector.multi_reduction <add>, %8, %cst_11 [1] : vector<8x8x128xf32> to vector<8x128xf32>
    %cst_12 = arith.constant 8.000000e+00 : f32
    %10 = vector.broadcast %cst_12 : f32 to vector<8x128xf32>
    %11 = arith.divf %9, %10 : vector<8x128xf32>
    %12 = tpu.concatenate %3, %7, %11 in 0 : vector<8x128xf32>, vector<8x128xf32>, vector<8x128xf32> -> vector<24x128xf32>
    %c0_13 = arith.constant 0 : index
    %c0_14 = arith.constant 0 : index
    %13 = vector.load %arg4[%c0_13, %c0_14] : memref<128x128xf32, #tpu.memory_space<vmem>>, vector<128x128xf32>
    %cst_15 = arith.constant dense<0.000000e+00> : vector<24x128xf32>
    %14 = tpu.matmul %12, %13, %cst_15 {dimension_numbers = #tpu.dot_dimension_numbers<[1], [0], [0], [1], [0, 0, 1, 1], [], []>} : vector<24x128xf32>, vector<128x128xf32>, vector<24x128xf32> -> vector<24x128xf32>
    %15 = vector.extract_strided_slice %14 {offsets = [0, 0], sizes = [8, 128], strides = [1, 1]} : vector<24x128xf32> to vector<8x128xf32>
    %16 = vector.extract_strided_slice %14 {offsets = [8, 0], sizes = [8, 128], strides = [1, 1]} : vector<24x128xf32> to vector<8x128xf32>
    %17 = vector.extract_strided_slice %14 {offsets = [16, 0], sizes = [8, 128], strides = [1, 1]} : vector<24x128xf32> to vector<8x128xf32>
    %18 = arith.mulf %15, %15 : vector<8x128xf32>
    %cst_16 = arith.constant dense<0.000000e+00> : vector<8xf32>
    %19 = vector.multi_reduction <add>, %18, %cst_16 [1] : vector<8x128xf32> to vector<8xf32>
    %20 = vector.shape_cast %19 : vector<8xf32> to vector<8x1xf32>
    %21 = arith.mulf %16, %16 : vector<8x128xf32>
    %cst_17 = arith.constant dense<0.000000e+00> : vector<8xf32>
    %22 = vector.multi_reduction <add>, %21, %cst_17 [1] : vector<8x128xf32> to vector<8xf32>
    %23 = vector.shape_cast %22 : vector<8xf32> to vector<8x1xf32>
    %24 = arith.mulf %17, %17 : vector<8x128xf32>
    %cst_18 = arith.constant dense<0.000000e+00> : vector<8xf32>
    %25 = vector.multi_reduction <add>, %24, %cst_18 [1] : vector<8x128xf32> to vector<8xf32>
    %26 = vector.shape_cast %25 : vector<8xf32> to vector<8x1xf32>
    %27 = arith.mulf %15, %16 : vector<8x128xf32>
    %cst_19 = arith.constant dense<0.000000e+00> : vector<8xf32>
    %28 = vector.multi_reduction <add>, %27, %cst_19 [1] : vector<8x128xf32> to vector<8xf32>
    %29 = vector.shape_cast %28 : vector<8xf32> to vector<8x1xf32>
    %30 = arith.mulf %15, %17 : vector<8x128xf32>
    %cst_20 = arith.constant dense<0.000000e+00> : vector<8xf32>
    %31 = vector.multi_reduction <add>, %30, %cst_20 [1] : vector<8x128xf32> to vector<8xf32>
    %32 = vector.shape_cast %31 : vector<8xf32> to vector<8x1xf32>
    %33 = math.rsqrt %20 : vector<8x1xf32>
    %34 = math.rsqrt %23 : vector<8x1xf32>
    %35 = math.rsqrt %26 : vector<8x1xf32>
    %36 = arith.mulf %33, %34 : vector<8x1xf32>
    %cst_21 = arith.constant 1.000000e+06 : f32
    %37 = vector.broadcast %cst_21 : f32 to vector<8x1xf32>
    %38 = arith.minimumf %36, %37 : vector<8x1xf32>
    %39 = arith.mulf %29, %38 : vector<8x1xf32>
    %cst_22 = arith.constant 1.000000e+00 : f32
    %40 = vector.broadcast %cst_22 : f32 to vector<8x1xf32>
    %41 = arith.subf %40, %39 : vector<8x1xf32>
    %42 = arith.mulf %33, %35 : vector<8x1xf32>
    %cst_23 = arith.constant 1.000000e+06 : f32
    %43 = vector.broadcast %cst_23 : f32 to vector<8x1xf32>
    %44 = arith.minimumf %42, %43 : vector<8x1xf32>
    %45 = arith.mulf %32, %44 : vector<8x1xf32>
    %cst_24 = arith.constant 1.000000e+00 : f32
    %46 = vector.broadcast %cst_24 : f32 to vector<8x1xf32>
    %47 = arith.subf %46, %45 : vector<8x1xf32>
    %48 = arith.subf %41, %47 : vector<8x1xf32>
    %cst_25 = arith.constant 5.000000e+00 : f32
    %49 = vector.broadcast %cst_25 : f32 to vector<8x1xf32>
    %50 = arith.addf %48, %49 : vector<8x1xf32>
    %cst_26 = arith.constant 0.000000e+00 : f32
    %51 = vector.broadcast %cst_26 : f32 to vector<8x1xf32>
    %52 = arith.maximumf %50, %51 : vector<8x1xf32>
    %53 = tpu.iota {dimensions = array<i32: 0>} : vector<8x1xi32>
    %c8_i32 = arith.constant 8 : i32
    %54 = arith.muli %arg0, %c8_i32 : i32
    %55 = vector.broadcast %54 : i32 to vector<8x1xi32>
    %56 = arith.addi %55, %53 : vector<8x1xi32>
    %c16_i32 = arith.constant 16 : i32
    %57 = vector.broadcast %c16_i32 : i32 to vector<8x1xi32>
    %58 = arith.cmpi slt, %56, %57 : vector<8x1xi32>
    %cst_27 = arith.constant 0.000000e+00 : f32
    %59 = vector.broadcast %cst_27 : f32 to vector<8x1xf32>
    %60 = arith.select %58, %52, %59 : vector<8x1xi1>, vector<8x1xf32>
    %61 = vector.shape_cast %60 : vector<8x1xf32> to vector<1x8x1xf32>
    %cst_28 = arith.constant dense<0.000000e+00> : vector<1xf32>
    %62 = vector.multi_reduction <add>, %61, %cst_28 [1, 2] : vector<1x8x1xf32> to vector<1xf32>
    %63 = vector.shape_cast %62 : vector<1xf32> to vector<1x1x1xf32>
    %64 = vector.extract %63[0, 0, 0] : f32 from vector<1x1x1xf32>
    %65 = vector.broadcast %64 : f32 to vector<1x1x1xf32>
    %c0_29 = arith.constant 0 : index
    %c0_30 = arith.constant 0 : index
    %c0_31 = arith.constant 0 : index
    %66 = vector.load %arg5[%c0_29, %c0_30, %c0_31] : memref<1x1x1xf32, #tpu.memory_space<vmem>>, vector<1x1x1xf32>
    tpu.vector_store %arg5[%c0_29, %c0_30, %c0_31], %65 {strides = array<i32>} : memref<1x1x1xf32, #tpu.memory_space<vmem>>, vector<1x1x1xf32>,
    return
  }
  func.func @transform_0(%arg0: i32) -> (i32, i32, i32) {
    %c0_i32 = arith.constant 0 : i32
    %c0_i32_0 = arith.constant 0 : i32
    %c0_i32_1 = arith.constant 0 : i32
    return %arg0, %c0_i32, %c0_i32_0 : i32, i32, i32
  }
  func.func @transform_1(%arg0: i32) -> (i32, i32, i32) {
    %c0_i32 = arith.constant 0 : i32
    %c0_i32_0 = arith.constant 0 : i32
    %c0_i32_1 = arith.constant 0 : i32
    return %arg0, %c0_i32, %c0_i32_0 : i32, i32, i32
  }
  func.func @transform_2(%arg0: i32) -> (i32, i32, i32) {
    %c0_i32 = arith.constant 0 : i32
    %c0_i32_0 = arith.constant 0 : i32
    %c0_i32_1 = arith.constant 0 : i32
    return %arg0, %c0_i32, %c0_i32_0 : i32, i32, i32
  }
  func.func @transform_3(%arg0: i32) -> (i32, i32) {
    %c0_i32 = arith.constant 0 : i32
    %c0_i32_0 = arith.constant 0 : i32
    %c0_i32_1 = arith.constant 0 : i32
    return %c0_i32, %c0_i32_0 : i32, i32
  }
  func.func @transform_4(%arg0: i32) -> (i32, i32, i32) {
    %c0_i32 = arith.constant 0 : i32
    %c0_i32_0 = arith.constant 0 : i32
    %c0_i32_1 = arith.constant 0 : i32
    return %arg0, %c0_i32, %c0_i32_0 : i32, i32, i32
  }
}

</mosaic_0001>

<llo_original>
// kernel: tpu_custom_call.1
$region0: #{tpu_custom_call.1}
  #allocation0 [shape = 'u32[]', space=smem, size = 0x4, offset = 0x4, fixed_abs, tag = 'smem constant byte address 0x4 - core index']
  #allocation1 [shape = 'u32[72,128]{1,0:T(1,128)}', space=vmem, size = 0x9000, scoped, tag = 'internal scratch']
  %s0 = inlined_call_operand.hbm [shape: f32[16,8,128], index: 0, kind: input, shape index: {}]
  %s1 = inlined_call_operand.hbm [shape: f32[16,8,128], index: 1, kind: input, shape index: {}]
  %s2 = inlined_call_operand.hbm [shape: f32[16,8,128], index: 2, kind: input, shape index: {}]
  %s3 = inlined_call_operand.hbm [shape: f32[128,128], index: 3, kind: input, shape index: {}]
  %s4 = inlined_call_operand.vmem [shape: f32[2,1,1], index: 4, kind: output, shape index: {}]
  %s5 = sld [smem:[#allocation0]]
  $region65: #{tpu_custom_call.1} parent=0
    _
  %s7 = ssub.s32 1, %s5
  %s8 = scalar_select 0, %s7, %s5
  $region1: #{tpu_custom_call.1} parent=0
    #allocation2 [shape = 'u8[65536]{0}', space=vmem, size = 0x10000, scoped, tag = 'input window, operand 0']
    #allocation3 [shape = 's32[2]{0}', space=sflag, size = 0x8, scoped, tag = 'scoped memory for tpu_custom_call.1']
    #allocation4 [shape = 'u8[65536]{0}', space=vmem, size = 0x10000, scoped, tag = 'input window, operand 1']
    #allocation5 [shape = 's32[2]{0}', space=sflag, size = 0x8, scoped, tag = 'scoped memory for tpu_custom_call.1']
    #allocation6 [shape = 'u8[65536]{0}', space=vmem, size = 0x10000, scoped, tag = 'input window, operand 2']
    #allocation7 [shape = 'u8[65536]{0}', space=vmem, size = 0x10000, scoped, tag = 'input window, operand 3, single buffered']
    #allocation8 [shape = 's32[1]{0}', space=sflag, size = 0x4, scoped, tag = 'scoped memory for tpu_custom_call.1']
    %9 = vsyncpa [#allocation3], 0
    %s10 = scalar_lea.sflag [#allocation3], 1
    %11 = vsyncpa %s10, 0
    %12 = vsyncpa [#allocation5], 0
    %s13 = scalar_lea.sflag [#allocation5], 1
    %14 = vsyncpa %s13, 0
    %15 = vsyncpa [#allocation8], 0
    loop: start=0, step=1, limit=4
    $region2: #{tpu_custom_call.1} parent=1 // loop_pre_header
      _
    $region3: #{tpu_custom_call.1} parent=1 // loop_header
      %s17 = sphi 0, %s21
      %p18 = scmp.ge.s32.totalorder %s17, 4
      %s27 = sphi 0, %s29
      %s30 = sphi 0, %s27
      %s31 = sphi 0, %s30
      %s47 = sphi 0, %s31
      %s53 = sphi 0, %s55
      %s56 = sphi 0, %s53
      %s57 = sphi 0, %s56
      %s73 = sphi 0, %s57
      %s79 = sphi 0, %s81
      %s82 = sphi 0, %s79
      %s83 = sphi 0, %s82
      %s99 = sphi 0, %s83
      %s103 = sphi 0, %s103
      %s105 = sphi 0, %s103
      %s106 = sphi 0, %s105
      %s120 = sphi 0, %s106
      %s126 = sphi 0, %s128
      %s129 = sphi 0, %s126
      %s130 = sphi 0, %s129
      %s146 = sphi 0, %s130
    $region4: #{tpu_custom_call.1} parent=1 // loop_header_branch
      %20 = sbr.rel (%p18) target = $region8
    $region5: #{tpu_custom_call.1} parent=1 // loop_body
      %s22 = ssub.s32 %s17, 1
      %s23 = ssub.s32 %s17, 2
      %s24 = sadd.s32 %s17, 1
      %s25 = ssub.s32 %s17, %s24
      %p26 = scmp.eq.s32.totalorder %s25, 0
      %s28 = sadd.s32 %s27, 1
      %s29 = scalar_select %p26, %s27, %s28
      %p32 = pneg %p26
      %p33 = scmp.eq.s32.totalorder %s17, 1
      %p34 = por %p32, %p33
      %p35 = scmp.ne.s32.totalorder %s27, %s30
      %p36 = scmp.eq.s32.totalorder %s17, 0
      %p37 = por %p35, %p36
      %p38 = scmp.ne.s32.totalorder %s27, %s30
      %p39 = scmp.eq.s32.totalorder %s22, 1
      %p40 = por %p38, %p39
      %p41 = scmp.ne.s32.totalorder %s30, %s31
      %p42 = scmp.eq.s32.totalorder %s22, 0
      %p43 = por %p41, %p42
      %p44 = scmp.ne.s32.totalorder %s30, %s31
      %p45 = scmp.eq.s32.totalorder %s23, 1
      %p46 = por %p44, %p45
      %p48 = scmp.ne.s32.totalorder %s31, %s47
      %p49 = scmp.eq.s32.totalorder %s23, 0
      %p50 = por %p48, %p49
      %s51 = ssub.s32 %s17, %s24
      %p52 = scmp.eq.s32.totalorder %s51, 0
      %s54 = sadd.s32 %s53, 1
      %s55 = scalar_select %p52, %s53, %s54
      %p58 = pneg %p52
      %p59 = scmp.eq.s32.totalorder %s17, 1
      %p60 = por %p58, %p59
      %p61 = scmp.ne.s32.totalorder %s53, %s56
      %p62 = scmp.eq.s32.totalorder %s17, 0
      %p63 = por %p61, %p62
      %p64 = scmp.ne.s32.totalorder %s53, %s56
      %p65 = scmp.eq.s32.totalorder %s22, 1
      %p66 = por %p64, %p65
      %p67 = scmp.ne.s32.totalorder %s56, %s57
      %p68 = scmp.eq.s32.totalorder %s22, 0
      %p69 = por %p67, %p68
      %p70 = scmp.ne.s32.totalorder %s56, %s57
      %p71 = scmp.eq.s32.totalorder %s23, 1
      %p72 = por %p70, %p71
      %p74 = scmp.ne.s32.totalorder %s57, %s73
      %p75 = scmp.eq.s32.totalorder %s23, 0
      %p76 = por %p74, %p75
      %s77 = ssub.s32 %s17, %s24
      %p78 = scmp.eq.s32.totalorder %s77, 0
      %s80 = sadd.s32 %s79, 1
      %s81 = scalar_select %p78, %s79, %s80
      %p84 = pneg %p78
      %p85 = scmp.eq.s32.totalorder %s17, 1
      %p86 = por %p84, %p85
      %p87 = scmp.ne.s32.totalorder %s79, %s82
      %p88 = scmp.eq.s32.totalorder %s17, 0
      %p89 = por %p87, %p88
      %p90 = scmp.ne.s32.totalorder %s79, %s82
      %p91 = scmp.eq.s32.totalorder %s22, 1
      %p92 = por %p90, %p91
      %p93 = scmp.ne.s32.totalorder %s82, %s83
      %p94 = scmp.eq.s32.totalorder %s22, 0
      %p95 = por %p93, %p94
      %p96 = scmp.ne.s32.totalorder %s82, %s83
      %p97 = scmp.eq.s32.totalorder %s23, 1
      %p98 = por %p96, %p97
      %p100 = scmp.ne.s32.totalorder %s83, %s99
      %p101 = scmp.eq.s32.totalorder %s23, 0
      %p102 = por %p100, %p101
      %s104 = sadd.s32 %s103, 1
      %p107 = scmp.eq.s32.totalorder %s17, 1
      %p108 = scmp.ne.s32.totalorder %s103, %s105
      %p109 = scmp.eq.s32.totalorder %s17, 0
      %p110 = por %p108, %p109
      %p111 = scmp.ne.s32.totalorder %s103, %s105
      %p112 = scmp.eq.s32.totalorder %s22, 1
      %p113 = por %p111, %p112
      %p114 = scmp.ne.s32.totalorder %s105, %s106
      %p115 = scmp.eq.s32.totalorder %s22, 0
      %p116 = por %p114, %p115
      %p117 = scmp.ne.s32.totalorder %s105, %s106
      %p118 = scmp.eq.s32.totalorder %s23, 1
      %p119 = por %p117, %p118
      %p121 = scmp.ne.s32.totalorder %s106, %s120
      %p122 = scmp.eq.s32.totalorder %s23, 0
      %p123 = por %p121, %p122
      %s124 = ssub.s32 %s17, %s24
      %p125 = scmp.eq.s32.totalorder %s124, 0
      %s127 = sadd.s32 %s126, 1
      %s128 = scalar_select %p125, %s126, %s127
      %p131 = pneg %p125
      %p132 = scmp.eq.s32.totalorder %s17, 1
      %p133 = por %p131, %p132
      %p134 = scmp.ne.s32.totalorder %s126, %s129
      %p135 = scmp.eq.s32.totalorder %s17, 0
      %p136 = por %p134, %p135
      %p137 = scmp.ne.s32.totalorder %s126, %s129
      %p138 = scmp.eq.s32.totalorder %s22, 1
      %p139 = por %p137, %p138
      %p140 = scmp.ne.s32.totalorder %s129, %s130
      %p141 = scmp.eq.s32.totalorder %s22, 0
      %p142 = por %p140, %p141
      %p143 = scmp.ne.s32.totalorder %s129, %s130
      %p144 = scmp.eq.s32.totalorder %s23, 1
      %p145 = por %p143, %p144
      %p147 = scmp.ne.s32.totalorder %s130, %s146
      %p148 = scmp.eq.s32.totalorder %s23, 0
      %p149 = por %p147, %p148
      %p150 = scmp.le.s32.totalorder 1, %s17
      %p151 = scmp.lt.s32.totalorder %s17, 3
      %p152 = pnand %p150, %p151
      %p153 = pneg %p152
      // Predicated region
      $region9: #{tpu_custom_call.1} parent=5 // pred_check
        _
      $region10: #{tpu_custom_call.1} parent=5 // pred_check_branch
        %155 = sbr.rel (%p152) target = $region12
      $region11: #{tpu_custom_call.1} parent=5 // pred_region
        %s156 = ssub.s32 %s17, 1
        // Predicated region
        $region13: #{tpu_custom_call.1} parent=11 // pred_check
          %p157 = pneg %p116
        $region14: #{tpu_custom_call.1} parent=11 // pred_check_branch
          %159 = sbr.rel (%p157) target = $region16
        $region15: #{tpu_custom_call.1} parent=11 // pred_region
          %161 = vsyncadd [#allocation8], 0
          %s162 = sshll.u32 %s3, 4
          %s163 = int_to_ptr.hbm [resolvable:$true] %s162
          %s164 = sshll.u32 [#allocation7], 4
          %s165 = int_to_ptr.vmem [resolvable:$true] %s164
          %170 = dma.hbm_to_vmem [thread:$0]  %s163, 2048, %s165, [#allocation8], 128, 128, 8
        $region16: #{tpu_custom_call.1} parent=11 // pred_fallthru
          _
      $region12: #{tpu_custom_call.1} parent=5 // pred_fallthru
        _
      %p171 = scmp.lt.s32.totalorder %s17, 2
      // Predicated region
      $region17: #{tpu_custom_call.1} parent=5 // pred_check
        %p172 = pneg %p171
      $region18: #{tpu_custom_call.1} parent=5 // pred_check_branch
        %174 = sbr.rel (%p172) target = $region20
      $region19: #{tpu_custom_call.1} parent=5 // pred_region
        // Predicated region
        $region21: #{tpu_custom_call.1} parent=19 // pred_check
          %p175 = pneg %p37
        $region22: #{tpu_custom_call.1} parent=19 // pred_check_branch
          %177 = sbr.rel (%p175) target = $region24
        $region23: #{tpu_custom_call.1} parent=19 // pred_region
          %s178 = sand.u32 %s27, 1
          %s179 = scalar_lea.sflag [#allocation3], %s178
          %s180 = sand.u32 %s27, 1
          %s181 = smul.addr %s180, 64
          %s182 = scalar_lea.vmem [#allocation2], %s181
          %s183 = smul.u32 8, %s17
          %185 = vsyncadd %s179, 0
          %s186 = smul.addr %s183, 8
          %s187 = scalar_lea.hbm %s0, %s186
          %s188 = sshll.u32 %s187, 4
          %s189 = int_to_ptr.hbm [resolvable:$true] %s188
          %s190 = sshll.u32 %s182, 4
          %s191 = int_to_ptr.vmem [resolvable:$true] %s190
          %196 = dma.hbm_to_vmem [thread:$0]  %s189, 1024, %s191, %s179, 128, 128, 8
        $region24: #{tpu_custom_call.1} parent=19 // pred_fallthru
          _
        // Predicated region
        $region25: #{tpu_custom_call.1} parent=19 // pred_check
          %p197 = pneg %p63
        $region26: #{tpu_custom_call.1} parent=19 // pred_check_branch
          %199 = sbr.rel (%p197) target = $region28
        $region27: #{tpu_custom_call.1} parent=19 // pred_region
          %s200 = sand.u32 %s17, 1
          %s201 = scalar_lea.sflag [#allocation5], %s200
          %s202 = sand.u32 %s53, 1
          %s203 = smul.addr %s202, 64
          %s204 = scalar_lea.vmem [#allocation4], %s203
          %s205 = smul.u32 8, %s17
          %207 = vsyncadd %s201, 0
          %s208 = smul.addr %s205, 8
          %s209 = scalar_lea.hbm %s1, %s208
          %s210 = sshll.u32 %s209, 4
          %s211 = int_to_ptr.hbm [resolvable:$true] %s210
          %s212 = sshll.u32 %s204, 4
          %s213 = int_to_ptr.vmem [resolvable:$true] %s212
          %218 = dma.hbm_to_vmem [thread:$0]  %s211, 1024, %s213, %s201, 128, 128, 8
        $region28: #{tpu_custom_call.1} parent=19 // pred_fallthru
          _
        // Predicated region
        $region29: #{tpu_custom_call.1} parent=19 // pred_check
          %p219 = pneg %p89
        $region30: #{tpu_custom_call.1} parent=19 // pred_check_branch
          %221 = sbr.rel (%p219) target = $region32
        $region31: #{tpu_custom_call.1} parent=19 // pred_region
          %s222 = sand.u32 %s17, 1
          %s223 = scalar_lea.sflag [#allocation5], %s222
          %s224 = sand.u32 %s79, 1
          %s225 = smul.addr %s224, 64
          %s226 = scalar_lea.vmem [#allocation6], %s225
          %s227 = smul.u32 8, %s17
          %229 = vsyncadd %s223, 0
          %s230 = smul.addr %s227, 8
          %s231 = scalar_lea.hbm %s2, %s230
          %s232 = sshll.u32 %s231, 4
          %s233 = int_to_ptr.hbm [resolvable:$true] %s232
          %s234 = sshll.u32 %s226, 4
          %s235 = int_to_ptr.vmem [resolvable:$true] %s234
          %240 = dma.hbm_to_vmem [thread:$0]  %s233, 1024, %s235, %s223, 128, 128, 8
        $region32: #{tpu_custom_call.1} parent=19 // pred_fallthru
          _
      $region20: #{tpu_custom_call.1} parent=5 // pred_fallthru
        _
      %p241 = scmp.le.s32.totalorder 1, %s17
      %p242 = scmp.lt.s32.totalorder %s17, 3
      %p243 = pnand %p241, %p242
      %p244 = pneg %p243
      // Predicated region
      $region33: #{tpu_custom_call.1} parent=5 // pred_check
        _
      $region34: #{tpu_custom_call.1} parent=5 // pred_check_branch
        %246 = sbr.rel (%p243) target = $region36
      $region35: #{tpu_custom_call.1} parent=5 // pred_region
        %s247 = ssub.s32 %s17, 1
        %s248 = sand.u32 %s30, 1
        %s249 = scalar_lea.sflag [#allocation3], %s248
        %s250 = sand.u32 %s30, 1
        %s251 = smul.addr %s250, 64
        %s252 = scalar_lea.vmem [#allocation2], %s251
        // Predicated region
        $region37: #{tpu_custom_call.1} parent=35 // pred_check
          %p253 = pneg %p43
        $region38: #{tpu_custom_call.1} parent=35 // pred_check_branch
          %255 = sbr.rel (%p253) target = $region40
        $region39: #{tpu_custom_call.1} parent=35 // pred_region
          %257 = dma.done %s249, 1024
        $region40: #{tpu_custom_call.1} parent=35 // pred_fallthru
          _
        %s258 = sand.u32 %s22, 1
        %s259 = scalar_lea.sflag [#allocation5], %s258
        %s260 = sand.u32 %s56, 1
        %s261 = smul.addr %s260, 64
        %s262 = scalar_lea.vmem [#allocation4], %s261
        // Predicated region
        $region41: #{tpu_custom_call.1} parent=35 // pred_check
          %p263 = pneg %p69
        $region42: #{tpu_custom_call.1} parent=35 // pred_check_branch
          %265 = sbr.rel (%p263) target = $region44
        $region43: #{tpu_custom_call.1} parent=35 // pred_region
          %267 = dma.done %s259, 1024
        $region44: #{tpu_custom_call.1} parent=35 // pred_fallthru
          _
        %s268 = sand.u32 %s22, 1
        %s269 = scalar_lea.sflag [#allocation5], %s268
        %s270 = sand.u32 %s82, 1
        %s271 = smul.addr %s270, 64
        %s272 = scalar_lea.vmem [#allocation6], %s271
        // Predicated region
        $region45: #{tpu_custom_call.1} parent=35 // pred_check
          %p273 = pneg %p95
        $region46: #{tpu_custom_call.1} parent=35 // pred_check_branch
          %275 = sbr.rel (%p273) target = $region48
        $region47: #{tpu_custom_call.1} parent=35 // pred_region
          %277 = dma.done %s269, 1024
        $region48: #{tpu_custom_call.1} parent=35 // pred_fallthru
          _
        // Predicated region
        $region49: #{tpu_custom_call.1} parent=35 // pred_check
          %p278 = pneg %p116
        $region50: #{tpu_custom_call.1} parent=35 // pred_check_branch
          %280 = sbr.rel (%p278) target = $region52
        $region51: #{tpu_custom_call.1} parent=35 // pred_region
          %282 = dma.done [#allocation8], 2048
        $region52: #{tpu_custom_call.1} parent=35 // pred_fallthru
          _
        %s283 = sand.u32 %s30, 1
        %s284 = scalar_lea.sflag [#allocation3], %s283
        %s285 = sand.u32 %s30, 1
        %s286 = smul.addr %s285, 64
        %s287 = scalar_lea.vmem [#allocation2], %s286
        %p288 = pneg %p43
        %p289 = pneg %p40
        %s290 = sand.u32 %s22, 1
        %s291 = scalar_lea.sflag [#allocation5], %s290
        %s292 = sand.u32 %s56, 1
        %s293 = smul.addr %s292, 64
        %s294 = scalar_lea.vmem [#allocation4], %s293
        %p295 = pneg %p69
        %p296 = pneg %p66
        %s297 = sand.u32 %s22, 1
        %s298 = scalar_lea.sflag [#allocation5], %s297
        %s299 = sand.u32 %s82, 1
        %s300 = smul.addr %s299, 64
        %s301 = scalar_lea.vmem [#allocation6], %s300
        %p302 = pneg %p95
        %p303 = pneg %p92
        %p304 = pneg %p116
        %p305 = pneg %p113
        %p306 = pneg %p142
        %p307 = pneg %p139
        %p308 = scmp.lt.s32.totalorder %s22, 1
        %s309 = scalar_select %p308, %s22, 1
        %s310 = scalar_lea.vmem %s4, %s309
        %s311 = smul.u32 8, %s22
        %s312 = smul.u32 8, %s22
        %s313 = smul.u32 8, %s22
        %p314 = scmp.lt.s32.totalorder %s22, 1
        %s315 = scalar_select %p314, %s22, 1
        %s316 = scalar_lea.vmem %s4, %s315
        %v317 = vld [vmem:[%s252] sm:$0xff]
        %v318 = vld [vmem:[%s252 + $0x8] sm:$0xff]
        %v319 = vld [vmem:[%s252 + $0x10] sm:$0xff]
        %v320 = vld [vmem:[%s252 + $0x18] sm:$0xff]
        %v321 = vld [vmem:[%s252 + $0x20] sm:$0xff]
        %v322 = vld [vmem:[%s252 + $0x28] sm:$0xff]
        %v323 = vld [vmem:[%s252 + $0x30] sm:$0xff]
        %v324 = vld [vmem:[%s252 + $0x38] sm:$0xff]
        %v325 = vrot.slane %v317, 4
        %v326 = vadd.f32 %v317, %v325
        %v327 = vrot.slane %v326, 2
        %v328 = vadd.f32 %v326, %v327
        %v329 = vrot.slane %v328, 1
        %v330 = vadd.f32 %v328, %v329
        %v331 = vrot.slane %v318, 4
        %v332 = vadd.f32 %v318, %v331
        %v333 = vrot.slane %v332, 2
        %v334 = vadd.f32 %v332, %v333
        %v335 = vrot.slane %v334, 1
        %v336 = vadd.f32 %v334, %v335
        %v337 = vrot.slane %v319, 4
        %v338 = vadd.f32 %v319, %v337
        %v339 = vrot.slane %v338, 2
        %v340 = vadd.f32 %v338, %v339
        %v341 = vrot.slane %v340, 1
        %v342 = vadd.f32 %v340, %v341
        %v343 = vrot.slane %v320, 4
        %v344 = vadd.f32 %v320, %v343
        %v345 = vrot.slane %v344, 2
        %v346 = vadd.f32 %v344, %v345
        %v347 = vrot.slane %v346, 1
        %v348 = vadd.f32 %v346, %v347
        %v349 = vrot.slane %v321, 4
        %v350 = vadd.f32 %v321, %v349
        %v351 = vrot.slane %v350, 2
        %v352 = vadd.f32 %v350, %v351
        %v353 = vrot.slane %v352, 1
        %v354 = vadd.f32 %v352, %v353
        %v355 = vrot.slane %v322, 4
        %v356 = vadd.f32 %v322, %v355
        %v357 = vrot.slane %v356, 2
        %v358 = vadd.f32 %v356, %v357
        %v359 = vrot.slane %v358, 1
        %v360 = vadd.f32 %v358, %v359
        %v361 = vrot.slane %v323, 4
        %v362 = vadd.f32 %v323, %v361
        %v363 = vrot.slane %v362, 2
        %v364 = vadd.f32 %v362, %v363
        %v365 = vrot.slane %v364, 1
        %v366 = vadd.f32 %v364, %v365
        %v367 = vrot.slane %v324, 4
        %v368 = vadd.f32 %v324, %v367
        %v369 = vrot.slane %v368, 2
        %v370 = vadd.f32 %v368, %v369
        %v371 = vrot.slane %v370, 1
        %v372 = vadd.f32 %v370, %v371
        %v373 = vrcp.pop 8.0
        %v374 = vmul.f32 8.0, %v373
        %v375 = vsub.f32 1.0, %v374
        %v376 = vmul.f32 %v373, %v375
        %v377 = vadd.f32 %v373, %v376
        %vm378 = vweird.f32 %v373
        %v379 = vsel %vm378, %v373, %v377
        %v380 = vmul.f32 %v330, %v379
        %v381 = vmul.f32 %v336, %v379
        %v382 = vmul.f32 %v342, %v379
        %v383 = vmul.f32 %v348, %v379
        %v384 = vmul.f32 %v354, %v379
        %v385 = vmul.f32 %v360, %v379
        %v386 = vmul.f32 %v366, %v379
        %v387 = vmul.f32 %v372, %v379
        %v388 = vld [vmem:[%s262] sm:$0xff]
        %v389 = vld [vmem:[%s262 + $0x8] sm:$0xff]
        %v390 = vld [vmem:[%s262 + $0x10] sm:$0xff]
        %v391 = vld [vmem:[%s262 + $0x18] sm:$0xff]
        %v392 = vld [vmem:[%s262 + $0x20] sm:$0xff]
        %v393 = vld [vmem:[%s262 + $0x28] sm:$0xff]
        %v394 = vld [vmem:[%s262 + $0x30] sm:$0xff]
        %v395 = vld [vmem:[%s262 + $0x38] sm:$0xff]
        %v396 = vrot.slane %v388, 4
        %v397 = vadd.f32 %v388, %v396
        %v398 = vrot.slane %v397, 2
        %v399 = vadd.f32 %v397, %v398
        %v400 = vrot.slane %v399, 1
        %v401 = vadd.f32 %v399, %v400
        %v402 = vrot.slane %v389, 4
        %v403 = vadd.f32 %v389, %v402
        %v404 = vrot.slane %v403, 2
        %v405 = vadd.f32 %v403, %v404
        %v406 = vrot.slane %v405, 1
        %v407 = vadd.f32 %v405, %v406
        %v408 = vrot.slane %v390, 4
        %v409 = vadd.f32 %v390, %v408
        %v410 = vrot.slane %v409, 2
        %v411 = vadd.f32 %v409, %v410
        %v412 = vrot.slane %v411, 1
        %v413 = vadd.f32 %v411, %v412
        %v414 = vrot.slane %v391, 4
        %v415 = vadd.f32 %v391, %v414
        %v416 = vrot.slane %v415, 2
        %v417 = vadd.f32 %v415, %v416
        %v418 = vrot.slane %v417, 1
        %v419 = vadd.f32 %v417, %v418
        %v420 = vrot.slane %v392, 4
        %v421 = vadd.f32 %v392, %v420
        %v422 = vrot.slane %v421, 2
        %v423 = vadd.f32 %v421, %v422
        %v424 = vrot.slane %v423, 1
        %v425 = vadd.f32 %v423, %v424
        %v426 = vrot.slane %v393, 4
        %v427 = vadd.f32 %v393, %v426
        %v428 = vrot.slane %v427, 2
        %v429 = vadd.f32 %v427, %v428
        %v430 = vrot.slane %v429, 1
        %v431 = vadd.f32 %v429, %v430
        %v432 = vrot.slane %v394, 4
        %v433 = vadd.f32 %v394, %v432
        %v434 = vrot.slane %v433, 2
        %v435 = vadd.f32 %v433, %v434
        %v436 = vrot.slane %v435, 1
        %v437 = vadd.f32 %v435, %v436
        %v438 = vrot.slane %v395, 4
        %v439 = vadd.f32 %v395, %v438
        %v440 = vrot.slane %v439, 2
        %v441 = vadd.f32 %v439, %v440
        %v442 = vrot.slane %v441, 1
        %v443 = vadd.f32 %v441, %v442
        %v444 = vmul.f32 %v401, %v379
        %v445 = vmul.f32 %v407, %v379
        %v446 = vmul.f32 %v413, %v379
        %v447 = vmul.f32 %v419, %v379
        %v448 = vmul.f32 %v425, %v379
        %v449 = vmul.f32 %v431, %v379
        %v450 = vmul.f32 %v437, %v379
        %v451 = vmul.f32 %v443, %v379
        %v452 = vld [vmem:[%s272] sm:$0xff]
        %v453 = vld [vmem:[%s272 + $0x8] sm:$0xff]
        %v454 = vld [vmem:[%s272 + $0x10] sm:$0xff]
        %v455 = vld [vmem:[%s272 + $0x18] sm:$0xff]
        %v456 = vld [vmem:[%s272 + $0x20] sm:$0xff]
        %v457 = vld [vmem:[%s272 + $0x28] sm:$0xff]
        %v458 = vld [vmem:[%s272 + $0x30] sm:$0xff]
        %v459 = vld [vmem:[%s272 + $0x38] sm:$0xff]
        %v460 = vrot.slane %v452, 4
        %v461 = vadd.f32 %v452, %v460
        %v462 = vrot.slane %v461, 2
        %v463 = vadd.f32 %v461, %v462
        %v464 = vrot.slane %v463, 1
        %v465 = vadd.f32 %v463, %v464
        %v466 = vrot.slane %v453, 4
        %v467 = vadd.f32 %v453, %v466
        %v468 = vrot.slane %v467, 2
        %v469 = vadd.f32 %v467, %v468
        %v470 = vrot.slane %v469, 1
        %v471 = vadd.f32 %v469, %v470
        %v472 = vrot.slane %v454, 4
        %v473 = vadd.f32 %v454, %v472
        %v474 = vrot.slane %v473, 2
        %v475 = vadd.f32 %v473, %v474
        %v476 = vrot.slane %v475, 1
        %v477 = vadd.f32 %v475, %v476
        %v478 = vrot.slane %v455, 4
        %v479 = vadd.f32 %v455, %v478
        %v480 = vrot.slane %v479, 2
        %v481 = vadd.f32 %v479, %v480
        %v482 = vrot.slane %v481, 1
        %v483 = vadd.f32 %v481, %v482
        %v484 = vrot.slane %v456, 4
        %v485 = vadd.f32 %v456, %v484
        %v486 = vrot.slane %v485, 2
        %v487 = vadd.f32 %v485, %v486
        %v488 = vrot.slane %v487, 1
        %v489 = vadd.f32 %v487, %v488
        %v490 = vrot.slane %v457, 4
        %v491 = vadd.f32 %v457, %v490
        %v492 = vrot.slane %v491, 2
        %v493 = vadd.f32 %v491, %v492
        %v494 = vrot.slane %v493, 1
        %v495 = vadd.f32 %v493, %v494
        %v496 = vrot.slane %v458, 4
        %v497 = vadd.f32 %v458, %v496
        %v498 = vrot.slane %v497, 2
        %v499 = vadd.f32 %v497, %v498
        %v500 = vrot.slane %v499, 1
        %v501 = vadd.f32 %v499, %v500
        %v502 = vrot.slane %v459, 4
        %v503 = vadd.f32 %v459, %v502
        %v504 = vrot.slane %v503, 2
        %v505 = vadd.f32 %v503, %v504
        %v506 = vrot.slane %v505, 1
        %v507 = vadd.f32 %v505, %v506
        %v508 = vmul.f32 %v465, %v379
        %v509 = vmul.f32 %v471, %v379
        %v510 = vmul.f32 %v477, %v379
        %v511 = vmul.f32 %v483, %v379
        %v512 = vmul.f32 %v489, %v379
        %v513 = vmul.f32 %v495, %v379
        %v514 = vmul.f32 %v501, %v379
        %v515 = vmul.f32 %v507, %v379
        %vm524 = vcmask 1041409
        %v525 = vsel %vm524, %v381, %v380
        %vm526 = vcmask 1042434
        %v527 = vsel %vm526, %v382, %v525
        %vm528 = vcmask 1043459
        %v529 = vsel %vm528, %v383, %v527
        %vm530 = vcmask 1044484
        %v531 = vsel %vm530, %v384, %v529
        %vm532 = vcmask 1045509
        %v533 = vsel %vm532, %v385, %v531
        %vm534 = vcmask 1046534
        %v535 = vsel %vm534, %v386, %v533
        %vm536 = vcmask 1047559
        %v537 = vsel %vm536, %v387, %v535
        %v547 = vsel %vm524, %v445, %v444
        %v548 = vsel %vm526, %v446, %v547
        %v549 = vsel %vm528, %v447, %v548
        %v550 = vsel %vm530, %v448, %v549
        %v551 = vsel %vm532, %v449, %v550
        %v552 = vsel %vm534, %v450, %v551
        %v553 = vsel %vm536, %v451, %v552
        %v563 = vsel %vm524, %v509, %v508
        %v564 = vsel %vm526, %v510, %v563
        %v565 = vsel %vm528, %v511, %v564
        %v566 = vsel %vm530, %v512, %v565
        %v567 = vsel %vm532, %v513, %v566
        %v568 = vsel %vm534, %v514, %v567
        %v569 = vsel %vm536, %v515, %v568
        %v571 = vld [vmem:[#allocation7] sm:$0xff]
        %v572 = vld [vmem:[#allocation7 + $0x8] sm:$0xff]
        %v573 = vld [vmem:[#allocation7 + $0x10] sm:$0xff]
        %v574 = vld [vmem:[#allocation7 + $0x18] sm:$0xff]
        %v575 = vld [vmem:[#allocation7 + $0x20] sm:$0xff]
        %v576 = vld [vmem:[#allocation7 + $0x28] sm:$0xff]
        %v577 = vld [vmem:[#allocation7 + $0x30] sm:$0xff]
        %v578 = vld [vmem:[#allocation7 + $0x38] sm:$0xff]
        %v579 = vld [vmem:[#allocation7 + $0x40] sm:$0xff]
        %v580 = vld [vmem:[#allocation7 + $0x48] sm:$0xff]
        %v581 = vld [vmem:[#allocation7 + $0x50] sm:$0xff]
        %v582 = vld [vmem:[#allocation7 + $0x58] sm:$0xff]
        %v583 = vld [vmem:[#allocation7 + $0x60] sm:$0xff]
        %v584 = vld [vmem:[#allocation7 + $0x68] sm:$0xff]
        %v585 = vld [vmem:[#allocation7 + $0x70] sm:$0xff]
        %v586 = vld [vmem:[#allocation7 + $0x78] sm:$0xff]
        %587 = vmatpush.msra.mxu0 %v586
        %588 = vmatpush.msra.mxu0 %v585
        %589 = vmatpush.msra.mxu0 %v584
        %590 = vmatpush.msra.mxu0 %v583
        %591 = vmatpush.msra.mxu0 %v582
        %592 = vmatpush.msra.mxu0 %v581
        %593 = vmatpush.msra.mxu0 %v580
        %594 = vmatpush.msra.mxu0 %v579
        %595 = vmatpush.msra.mxu0 %v578
        %596 = vmatpush.msra.mxu0 %v577
        %597 = vmatpush.msra.mxu0 %v576
        %598 = vmatpush.msra.mxu0 %v575
        %599 = vmatpush.msra.mxu0 %v574
        %600 = vmatpush.msra.mxu0 %v573
        %601 = vmatpush.msra.mxu0 %v572
        %602 = vmatpush.msra.mxu0 %v571
        %603 = vmatmul.f32.gmra.mxu0 %v537
        %v604 = vpop.f32.mrf.mxu0
        %v605 = vadd.f32 0.0, %v604
        %606 = vmatmul.f32.gmra.mxu0 %v553
        %v607 = vpop.f32.mrf.mxu0
        %v608 = vadd.f32 0.0, %v607
        %609 = vmatmul.f32.gmra.mxu0 %v569
        %v610 = vpop.f32.mrf.mxu0
        %v611 = vadd.f32 0.0, %v610
        %612 = vdwg.mxu0
        %v613 = vmul.f32 %v605, %v605
        %614 = vadd.xlane.f32.xlu0 %v613
        %v615 = vpop.xlane.xlu0 %614
        %v616 = vmul.f32 %v608, %v608
        %617 = vadd.xlane.f32.xlu0 %v616
        %v618 = vpop.xlane.xlu0 %617
        %v619 = vmul.f32 %v611, %v611
        %620 = vadd.xlane.f32.xlu0 %v619
        %v621 = vpop.xlane.xlu0 %620
        %v622 = vmul.f32 %v605, %v608
        %623 = vadd.xlane.f32.xlu0 %v622
        %v624 = vpop.xlane.xlu0 %623
        %v625 = vmul.f32 %v605, %v611
        %626 = vadd.xlane.f32.xlu0 %v625
        %v627 = vpop.xlane.xlu0 %626
        %v628 = vrsqrt.pop %v615
        %v629 = vmul.f32 %v628, %v615
        %v630 = vmul.f32 %v629, %v628
        %v631 = vmul.f32 0.5, %v630
        %v632 = vsub.f32 1.5, %v631
        %v633 = vmul.f32 %v628, %v632
        %vm634 = vweird.f32 %v615
        %vm635 = vweird.f32 %v628
        %vm636 = vmor %vm634, %vm635
        %v637 = vsel %vm636, %v628, %v633
        %v638 = vrsqrt.pop %v618
        %v639 = vmul.f32 %v638, %v618
        %v640 = vmul.f32 %v639, %v638
        %v641 = vmul.f32 0.5, %v640
        %v642 = vsub.f32 1.5, %v641
        %v643 = vmul.f32 %v638, %v642
        %vm644 = vweird.f32 %v618
        %vm645 = vweird.f32 %v638
        %vm646 = vmor %vm644, %vm645
        %v647 = vsel %vm646, %v638, %v643
        %v648 = vrsqrt.pop %v621
        %v649 = vmul.f32 %v648, %v621
        %v650 = vmul.f32 %v649, %v648
        %v651 = vmul.f32 0.5, %v650
        %v652 = vsub.f32 1.5, %v651
        %v653 = vmul.f32 %v648, %v652
        %vm654 = vweird.f32 %v621
        %vm655 = vweird.f32 %v648
        %vm656 = vmor %vm654, %vm655
        %v657 = vsel %vm656, %v648, %v653
        %v658 = vmul.f32 %v637, %v647
        %v659 = vmin.f32 %v658, 1000000.0
        %v660 = vmul.f32 %v624, %v659
        %v661 = vsub.f32 1.0, %v660
        %v662 = vmul.f32 %v637, %v657
        %v663 = vmin.f32 %v662, 1000000.0
        %v664 = vmul.f32 %v627, %v663
        %v665 = vsub.f32 1.0, %v664
        %v666 = vsub.f32 %v661, %v665
        %v667 = vadd.f32 %v666, 5.0
        %v668 = vmax.f32 %v667, 0.0
        %v669 = vlaneseq
        %v670 = vshrl.u32 %v669, 7
        %s671 = smul.u32 %s22, 8
        %v672 = vstv %s671
        %v673 = vadd.s32 %v672, %v670
        %vm674 = vcmp.lt.s32.totalorder %v673, 16
        %v675 = vsel %vm674, %v668, 0.0
        %vm676 = vcmask 7168
        %v677 = vsel %vm676, %v675, 0.0
        %678 = vadd.xlane.f32.xlu0 %v677
        %v679 = vpop.xlane.xlu0 %678
        %v680 = vrot.slane %v679, 4
        %v681 = vadd.f32 %v679, %v680
        %v682 = vrot.slane %v681, 2
        %v683 = vadd.f32 %v681, %v682
        %v684 = vrot.slane %v683, 1
        %v685 = vadd.f32 %v683, %v684
        %s686 = vtos %v685
        %v687 = vstv %s686
        %vm688 = vcmask 0
        %689 = vst.msk [vmem:[%s316] sm:$0x1] %vm688, %v687
        %p690 = scmp.lt.s32.totalorder %s22, 1
        %s691 = scalar_select %p690, %s22, 1
        %s692 = scalar_lea.vmem %s4, %s691
        // Predicated region
        $region53: #{tpu_custom_call.1} parent=35 // pred_check
          %p693 = pneg %p139
        $region54: #{tpu_custom_call.1} parent=35 // pred_check_branch
          %695 = sbr.rel (%p693) target = $region56
        $region55: #{tpu_custom_call.1} parent=35 // pred_region
          _
        $region56: #{tpu_custom_call.1} parent=35 // pred_fallthru
          _
      $region36: #{tpu_custom_call.1} parent=5 // pred_fallthru
        _
      %p696 = scmp.le.s32.totalorder 2, %s17
      // Predicated region
      $region57: #{tpu_custom_call.1} parent=5 // pred_check
        %p697 = pneg %p696
      $region58: #{tpu_custom_call.1} parent=5 // pred_check_branch
        %699 = sbr.rel (%p697) target = $region60
      $region59: #{tpu_custom_call.1} parent=5 // pred_region
        %s700 = ssub.s32 %s17, 2
        // Predicated region
        $region61: #{tpu_custom_call.1} parent=59 // pred_check
          %p701 = pneg %p145
        $region62: #{tpu_custom_call.1} parent=59 // pred_check_branch
          %703 = sbr.rel (%p701) target = $region64
        $region63: #{tpu_custom_call.1} parent=59 // pred_region
          %p704 = scmp.lt.s32.totalorder %s23, 1
          %s705 = scalar_select %p704, %s23, 1
          %s706 = scalar_lea.vmem %s4, %s705
        $region64: #{tpu_custom_call.1} parent=59 // pred_fallthru
          _
      $region60: #{tpu_custom_call.1} parent=5 // pred_fallthru
        _
    $region6: #{tpu_custom_call.1} parent=1 // loop_footer
      %s21 = sadd.s32 1, %s17
    $region7: #{tpu_custom_call.1} parent=1 // loop_footer_branch
      %16 = sbr.rel target = $region3
    $region8: #{tpu_custom_call.1} parent=1 // loop_exit
      _
    %707 = vsyncpa [#allocation3], 1
    %s708 = scalar_lea.sflag [#allocation3], 1
    %709 = vsyncpa %s708, 1
    %710 = vsyncpa [#allocation5], 1
    %s711 = scalar_lea.sflag [#allocation5], 1
    %712 = vsyncpa %s711, 1
    %713 = vsyncpa [#allocation8], 1

</llo_original>
